<compile_context>
chip_gen: v7x
topology: tpu7x:2x2x1
jax: 0.10.0
libtpu: 0.0.40
codegen_flags: <defaults>
</compile_context>

<pallas_src>
import jax
import jax.numpy as jnp
from jax.experimental import pallas as pl
from jax.experimental.pallas import tpu as pltpu

BN_EPS = 1e-5


def mlp_kernel(x_ref,
               w1_ref, b1_ref,
               w2_ref, b2_ref,
               w3_ref, b3_ref,
               w4_ref, b4_ref,
               o_ref):
    # layer_1 (+ folded BN1) -> relu            (bf16 x bf16 -> f32 acc)
    h = jnp.dot(x_ref[...], w1_ref[...], preferred_element_type=jnp.float32)
    h = jnp.maximum(h + b1_ref[...], 0.0)
    # layer_2 (+ folded BN2) -> relu -> dropout(identity in eval)
    h = jnp.dot(h.astype(jnp.bfloat16), w2_ref[...],
                preferred_element_type=jnp.float32)
    h = jnp.maximum(h + b2_ref[...], 0.0)
    # layer_3 (+ folded BN3, lane-padded to 128) -> relu -> dropout(identity)
    h = jnp.dot(h.astype(jnp.bfloat16), w3_ref[...],
                preferred_element_type=jnp.float32)
    h = jnp.maximum(h + b3_ref[...], 0.0)
    # layer_out (K padded to 128 with zero rows, N lane-padded to mult of 128)
    out = jnp.dot(h.astype(jnp.bfloat16), w4_ref[...],
                  preferred_element_type=jnp.float32) + b4_ref[...]
    o_ref[...] = out.astype(o_ref.dtype)


def _fold_bn(w, b, gamma, beta, mean, var):
    """Fold eval-mode BatchNorm1d into the preceding Linear (done in f32).

    w is PyTorch-layout (out, in). Returns ((in, out) weight, (1, out) bias)
    so that x @ W' + b' == BN_eval(x @ w.T + b).
    """
    scale = gamma * jax.lax.rsqrt(var + BN_EPS)      # (out,)
    w_t = w.T * scale[None, :]                        # (in, out)
    b_f = (b - mean) * scale + beta                   # (out,)
    return w_t, b_f.reshape(1, -1)


def multiclass_forward(x, params, *, batch_tile=None, return_padded=False):
    B, F = x.shape
    num_class = params["w_out"].shape[0]

    # ---- wrapper-side parameter prep: BN fold (f32) + bf16 cast + padding --
    w1, b1 = _fold_bn(params["w1"], params["b1"], params["bn1_g"],
                      params["bn1_b"], params["bn1_m"], params["bn1_v"])
    w2, b2 = _fold_bn(params["w2"], params["b2"], params["bn2_g"],
                      params["bn2_b"], params["bn2_m"], params["bn2_v"])
    w3, b3 = _fold_bn(params["w3"], params["b3"], params["bn3_g"],
                      params["bn3_b"], params["bn3_m"], params["bn3_v"])

    # Zero-pad layer 3 to 128 lanes: exact (ReLU(0)=0), keeps vregs lane-dense.
    h3_pad = 128
    k3 = w3.shape[1]                                   # 64
    w3p = jnp.zeros((w3.shape[0], h3_pad), jnp.float32).at[:, :k3].set(w3)
    b3p = jnp.zeros((1, h3_pad), jnp.float32).at[:, :k3].set(b3)

    # Pad output layer: K -> 128 (zero rows), N -> multiple of 128 lanes so the
    # writeback is a full unmasked vst; wrapper slices back to num_class.
    n_pad = 128 * pl.cdiv(num_class, 128)
    w4 = jnp.zeros((h3_pad, n_pad), jnp.float32).at[:k3, :num_class].set(
        params["w_out"].T)
    b4 = jnp.zeros((1, n_pad), jnp.float32).at[:, :num_class].set(
        params["b_out"])

    # bf16 operands for the MXU; biases stay f32 (bias+ReLU done in f32).
    x_bf = x.astype(jnp.bfloat16)
    w1, w2, w3p, w4 = (w.astype(jnp.bfloat16) for w in (w1, w2, w3p, w4))

    # ---- tiling: big batch tiles; >=2 grid steps for large B (v7x 2 TCs) ----
    if batch_tile is None:
        batch_tile = 2048
    if B >= 512:
        # Cap at ~ceil(B/2) (rounded up to 16 for bf16 sublane packing) so the
        # "parallel" batch axis has at least 2 steps -> both v7x cores work.
        half = -(-B // 2)
        half = -(-half // 16) * 16
        batch_tile = min(batch_tile, max(256, half))
    if batch_tile >= B:
        batch_tile = B                                  # grid=(1,), full block
    else:
        batch_tile = max(16, (batch_tile // 16) * 16)   # sublane alignment

    grid = (pl.cdiv(B, batch_tile),)

    args = (x_bf, w1, b1, w2, b2, w3p, b3p, w4, b4)

    def full_spec(a):
        # Whole (small) parameter lives in VMEM; same block every grid step,
        # so Pallas only DMAs it once.
        return pl.BlockSpec(a.shape, lambda i: (0,) * a.ndim)

    in_specs = [pl.BlockSpec((batch_tile, F), lambda i: (i, 0))]
    in_specs += [full_spec(a) for a in args[1:]]
    out_spec = pl.BlockSpec((batch_tile, n_pad), lambda i: (i, 0))

    out = pl.pallas_call(
        mlp_kernel,
        out_shape=jax.ShapeDtypeStruct((B, n_pad), jnp.float32),
        grid_spec=pltpu.PrefetchScalarGridSpec(
            num_scalar_prefetch=0,
            grid=grid,
            in_specs=in_specs,
            out_specs=out_spec,
        ),
        compiler_params=pltpu.CompilerParams(
            dimension_semantics=("parallel",)),
    )(*args)

    if return_padded:
        # Caller fuses the [:, :num_class] slice downstream (argmax/softmax),
        # avoiding an extra HBM read+write pass over the output.
        return out
    return out[:, :num_class]


def init_params(key, num_feature, num_class):
    """Deterministic synthetic init mirroring the PyTorch module's shapes."""
    dims = {"1": (num_feature, 512), "2": (512, 128),
            "3": (128, 64), "_out": (64, num_class)}
    params = {}
    for name, (fan_in, fan_out) in dims.items():
        key, kw, kb = jax.random.split(key, 3)
        bound = 1.0 / jnp.sqrt(fan_in)
        params[f"w{name}"] = jax.random.uniform(
            kw, (fan_out, fan_in), jnp.float32, -bound, bound)  # PyTorch (out, in)
        params[f"b{name}"] = jax.random.uniform(
            kb, (fan_out,), jnp.float32, -bound, bound)
    for c, name in zip([512, 128, 64], ["bn1", "bn2", "bn3"]):
        key, kg, kb, km, kv = jax.random.split(key, 5)
        params[f"{name}_g"] = 1.0 + 0.1 * jax.random.normal(kg, (c,), jnp.float32)
        params[f"{name}_b"] = 0.1 * jax.random.normal(kb, (c,), jnp.float32)
        params[f"{name}_m"] = 0.1 * jax.random.normal(km, (c,), jnp.float32)
        params[f"{name}_v"] = jax.random.uniform(kv, (c,), jnp.float32, 0.5, 1.5)
    return params


def reference_forward(x, p):
    """Pure-JAX f32 reference (eval mode) for a correctness check."""
    def bn_relu(h, name):
        inv = p[f"{name}_g"] * jax.lax.rsqrt(p[f"{name}_v"] + BN_EPS)
        return jnp.maximum((h - p[f"{name}_m"]) * inv + p[f"{name}_b"], 0.0)

    h = x @ p["w1"].T + p["b1"]
    h = bn_relu(h, "bn1")
    h = h @ p["w2"].T + p["b2"]
    h = bn_relu(h, "bn2")
    h = h @ p["w3"].T + p["b3"]
    h = bn_relu(h, "bn3")
    return h @ p["w_out"].T + p["b_out"]


if __name__ == "__main__":
    num_feature = 32
    num_class = 10
    batch = 32

    key = jax.random.PRNGKey(0)
    key, kx = jax.random.split(key)
    x = jax.random.normal(kx, (batch, num_feature), jnp.float32)
    params = init_params(key, num_feature, num_class)

    out = multiclass_forward(x, params)
    out = jax.block_until_ready(out)

    ref = reference_forward(x, params)
    assert out.shape == (batch, num_class)
    # bf16 matmul operands -> loosened tolerance vs the f32 reference.
    assert jnp.allclose(out, ref, atol=5e-2, rtol=5e-2), "mismatch vs reference"

    print("KERNEL_OK")
</pallas_src>

<mosaic_0001>
module attributes {stable_mosaic.version = 11 : i64} {
  func.func @mlp_kernel(%arg0: i32, %arg1: memref<32x32xbf16, #tpu.memory_space<vmem>>, %arg2: memref<32x512xbf16, #tpu.memory_space<vmem>>, %arg3: memref<1x512xf32, #tpu.memory_space<vmem>>, %arg4: memref<512x128xbf16, #tpu.memory_space<vmem>>, %arg5: memref<1x128xf32, #tpu.memory_space<vmem>>, %arg6: memref<128x128xbf16, #tpu.memory_space<vmem>>, %arg7: memref<1x128xf32, #tpu.memory_space<vmem>>, %arg8: memref<128x128xbf16, #tpu.memory_space<vmem>>, %arg9: memref<1x128xf32, #tpu.memory_space<vmem>>, %arg10: memref<32x128xf32, #tpu.memory_space<vmem>>) attributes {dimension_semantics = [#tpu.dimension_semantics<parallel>], iteration_bounds = array<i64: 1>, scalar_prefetch = 0 : i64, scratch_operands = 0 : i64, tpu.core_type = #tpu.core_type<tc>, window_params = [{transform_indices = @transform_0, window_bounds = array<i64: 32, 32>}, {pipeline_mode = #tpu.pipeline_mode<synchronous>, transform_indices = @transform_1, window_bounds = array<i64: 32, 512>}, {pipeline_mode = #tpu.pipeline_mode<synchronous>, transform_indices = @transform_2, window_bounds = array<i64: 1, 512>}, {pipeline_mode = #tpu.pipeline_mode<synchronous>, transform_indices = @transform_3, window_bounds = array<i64: 512, 128>}, {pipeline_mode = #tpu.pipeline_mode<synchronous>, transform_indices = @transform_4, window_bounds = array<i64: 1, 128>}, {pipeline_mode = #tpu.pipeline_mode<synchronous>, transform_indices = @transform_5, window_bounds = array<i64: 128, 128>}, {pipeline_mode = #tpu.pipeline_mode<synchronous>, transform_indices = @transform_6, window_bounds = array<i64: 1, 128>}, {pipeline_mode = #tpu.pipeline_mode<synchronous>, transform_indices = @transform_7, window_bounds = array<i64: 128, 128>}, {pipeline_mode = #tpu.pipeline_mode<synchronous>, transform_indices = @transform_8, window_bounds = array<i64: 1, 128>}, {transform_indices = @transform_9, window_bounds = array<i64: 32, 128>}]} {
    %c0 = arith.constant 0 : index
    %c0_0 = arith.constant 0 : index
    %0 = vector.load %arg1[%c0, %c0_0] : memref<32x32xbf16, #tpu.memory_space<vmem>>, vector<32x32xbf16>
    %c0_1 = arith.constant 0 : index
    %c0_2 = arith.constant 0 : index
    %1 = vector.load %arg2[%c0_1, %c0_2] : memref<32x512xbf16, #tpu.memory_space<vmem>>, vector<32x512xbf16>
    %cst = arith.constant dense<0.000000e+00> : vector<32x512xf32>
    %2 = tpu.matmul %0, %1, %cst {dimension_numbers = #tpu.dot_dimension_numbers<[1], [0], [0], [1], [0, 0, 1, 1], [], []>} : vector<32x32xbf16>, vector<32x512xbf16>, vector<32x512xf32> -> vector<32x512xf32>
    %c0_3 = arith.constant 0 : index
    %c0_4 = arith.constant 0 : index
    %3 = vector.load %arg3[%c0_3, %c0_4] : memref<1x512xf32, #tpu.memory_space<vmem>>, vector<1x512xf32>
    %4 = vector.broadcast %3 : vector<1x512xf32> to vector<32x512xf32>
    %5 = arith.addf %2, %4 : vector<32x512xf32>
    %cst_5 = arith.constant 0.000000e+00 : f32
    %6 = vector.broadcast %cst_5 : f32 to vector<32x512xf32>
    %7 = arith.maximumf %5, %6 : vector<32x512xf32>
    %8 = arith.truncf %7 : vector<32x512xf32> to vector<32x512xbf16>
    %c0_6 = arith.constant 0 : index
    %c0_7 = arith.constant 0 : index
    %9 = vector.load %arg4[%c0_6, %c0_7] : memref<512x128xbf16, #tpu.memory_space<vmem>>, vector<512x128xbf16>
    %cst_8 = arith.constant dense<0.000000e+00> : vector<32x128xf32>
    %10 = tpu.matmul %8, %9, %cst_8 {dimension_numbers = #tpu.dot_dimension_numbers<[1], [0], [0], [1], [0, 0, 1, 1], [], []>} : vector<32x512xbf16>, vector<512x128xbf16>, vector<32x128xf32> -> vector<32x128xf32>
    %c0_9 = arith.constant 0 : index
    %c0_10 = arith.constant 0 : index
    %11 = vector.load %arg5[%c0_9, %c0_10] : memref<1x128xf32, #tpu.memory_space<vmem>>, vector<1x128xf32>
    %12 = vector.broadcast %11 : vector<1x128xf32> to vector<32x128xf32>
    %13 = arith.addf %10, %12 : vector<32x128xf32>
    %cst_11 = arith.constant 0.000000e+00 : f32
    %14 = vector.broadcast %cst_11 : f32 to vector<32x128xf32>
    %15 = arith.maximumf %13, %14 : vector<32x128xf32>
    %16 = arith.truncf %15 : vector<32x128xf32> to vector<32x128xbf16>
    %c0_12 = arith.constant 0 : index
    %c0_13 = arith.constant 0 : index
    %17 = vector.load %arg6[%c0_12, %c0_13] : memref<128x128xbf16, #tpu.memory_space<vmem>>, vector<128x128xbf16>
    %cst_14 = arith.constant dense<0.000000e+00> : vector<32x128xf32>
    %18 = tpu.matmul %16, %17, %cst_14 {dimension_numbers = #tpu.dot_dimension_numbers<[1], [0], [0], [1], [0, 0, 1, 1], [], []>} : vector<32x128xbf16>, vector<128x128xbf16>, vector<32x128xf32> -> vector<32x128xf32>
    %c0_15 = arith.constant 0 : index
    %c0_16 = arith.constant 0 : index
    %19 = vector.load %arg7[%c0_15, %c0_16] : memref<1x128xf32, #tpu.memory_space<vmem>>, vector<1x128xf32>
    %20 = vector.broadcast %19 : vector<1x128xf32> to vector<32x128xf32>
    %21 = arith.addf %18, %20 : vector<32x128xf32>
    %cst_17 = arith.constant 0.000000e+00 : f32
    %22 = vector.broadcast %cst_17 : f32 to vector<32x128xf32>
    %23 = arith.maximumf %21, %22 : vector<32x128xf32>
    %24 = arith.truncf %23 : vector<32x128xf32> to vector<32x128xbf16>
    %c0_18 = arith.constant 0 : index
    %c0_19 = arith.constant 0 : index
    %25 = vector.load %arg8[%c0_18, %c0_19] : memref<128x128xbf16, #tpu.memory_space<vmem>>, vector<128x128xbf16>
    %cst_20 = arith.constant dense<0.000000e+00> : vector<32x128xf32>
    %26 = tpu.matmul %24, %25, %cst_20 {dimension_numbers = #tpu.dot_dimension_numbers<[1], [0], [0], [1], [0, 0, 1, 1], [], []>} : vector<32x128xbf16>, vector<128x128xbf16>, vector<32x128xf32> -> vector<32x128xf32>
    %c0_21 = arith.constant 0 : index
    %c0_22 = arith.constant 0 : index
    %27 = vector.load %arg9[%c0_21, %c0_22] : memref<1x128xf32, #tpu.memory_space<vmem>>, vector<1x128xf32>
    %28 = vector.broadcast %27 : vector<1x128xf32> to vector<32x128xf32>
    %29 = arith.addf %26, %28 : vector<32x128xf32>
    %c0_23 = arith.constant 0 : index
    %c0_24 = arith.constant 0 : index
    %30 = vector.load %arg10[%c0_23, %c0_24] : memref<32x128xf32, #tpu.memory_space<vmem>>, vector<32x128xf32>
    tpu.vector_store %arg10[%c0_23, %c0_24], %29 {strides = array<i32>} : memref<32x128xf32, #tpu.memory_space<vmem>>, vector<32x128xf32>,
    return
  }
  func.func @transform_0(%arg0: i32) -> (i32, i32) {
    %c0_i32 = arith.constant 0 : i32
    %c0_i32_0 = arith.constant 0 : i32
    return %arg0, %c0_i32 : i32, i32
  }
  func.func @transform_1(%arg0: i32) -> (i32, i32) {
    %c0_i32 = arith.constant 0 : i32
    %c0_i32_0 = arith.constant 0 : i32
    %c0_i32_1 = arith.constant 0 : i32
    return %c0_i32, %c0_i32_0 : i32, i32
  }
  func.func @transform_2(%arg0: i32) -> (i32, i32) {
    %c0_i32 = arith.constant 0 : i32
    %c0_i32_0 = arith.constant 0 : i32
    %c0_i32_1 = arith.constant 0 : i32
    return %c0_i32, %c0_i32_0 : i32, i32
  }
  func.func @transform_3(%arg0: i32) -> (i32, i32) {
    %c0_i32 = arith.constant 0 : i32
    %c0_i32_0 = arith.constant 0 : i32
    %c0_i32_1 = arith.constant 0 : i32
    return %c0_i32, %c0_i32_0 : i32, i32
  }
  func.func @transform_4(%arg0: i32) -> (i32, i32) {
    %c0_i32 = arith.constant 0 : i32
    %c0_i32_0 = arith.constant 0 : i32
    %c0_i32_1 = arith.constant 0 : i32
    return %c0_i32, %c0_i32_0 : i32, i32
  }
  func.func @transform_5(%arg0: i32) -> (i32, i32) {
    %c0_i32 = arith.constant 0 : i32
    %c0_i32_0 = arith.constant 0 : i32
    %c0_i32_1 = arith.constant 0 : i32
    return %c0_i32, %c0_i32_0 : i32, i32
  }
  func.func @transform_6(%arg0: i32) -> (i32, i32) {
    %c0_i32 = arith.constant 0 : i32
    %c0_i32_0 = arith.constant 0 : i32
    %c0_i32_1 = arith.constant 0 : i32
    return %c0_i32, %c0_i32_0 : i32, i32
  }
  func.func @transform_7(%arg0: i32) -> (i32, i32) {
    %c0_i32 = arith.constant 0 : i32
    %c0_i32_0 = arith.constant 0 : i32
    %c0_i32_1 = arith.constant 0 : i32
    return %c0_i32, %c0_i32_0 : i32, i32
  }
  func.func @transform_8(%arg0: i32) -> (i32, i32) {
    %c0_i32 = arith.constant 0 : i32
    %c0_i32_0 = arith.constant 0 : i32
    %c0_i32_1 = arith.constant 0 : i32
    return %c0_i32, %c0_i32_0 : i32, i32
  }
  func.func @transform_9(%arg0: i32) -> (i32, i32) {
    %c0_i32 = arith.constant 0 : i32
    %c0_i32_0 = arith.constant 0 : i32
    return %arg0, %c0_i32 : i32, i32
  }
}

</mosaic_0001>

<llo_original>
// kernel: tpu_custom_call.1
$region0: #{tpu_custom_call.1}
  #allocation0 [shape = 'u32[]', space=smem, size = 0x4, offset = 0x4, fixed_abs, tag = 'smem constant byte address 0x4 - core index']
  #allocation1 [shape = 'u32[144,128]{1,0:T(1,128)}', space=vmem, size = 0x12000, scoped, tag = 'internal scratch']
  %s0 = inlined_call_operand.hbm [shape: bf16[32,32], index: 0, kind: input, shape index: {}]
  %s1 = inlined_call_operand.hbm [shape: bf16[32,512], index: 1, kind: input, shape index: {}]
  %s2 = inlined_call_operand.vmem [shape: f32[1,512], index: 2, kind: input, shape index: {}]
  %s3 = inlined_call_operand.hbm [shape: bf16[512,128], index: 3, kind: input, shape index: {}]
  %s4 = inlined_call_operand.vmem [shape: f32[1,128], index: 4, kind: input, shape index: {}]
  %s5 = inlined_call_operand.hbm [shape: bf16[128,128], index: 5, kind: input, shape index: {}]
  %s6 = inlined_call_operand.vmem [shape: f32[1,128], index: 6, kind: input, shape index: {}]
  %s7 = inlined_call_operand.hbm [shape: bf16[128,128], index: 7, kind: input, shape index: {}]
  %s8 = inlined_call_operand.vmem [shape: f32[1,128], index: 8, kind: input, shape index: {}]
  %s9 = inlined_call_operand.hbm [shape: f32[32,128], index: 9, kind: output, shape index: {}]
  %s10 = sld [smem:[#allocation0]]
  $region66: #{tpu_custom_call.1} parent=0
    _
  %s12 = ssub.s32 1, %s10
  %s13 = scalar_select 0, %s12, %s10
  $region1: #{tpu_custom_call.1} parent=0
    #allocation2 [shape = 'u8[8192]{0}', space=vmem, size = 0x2000, scoped, tag = 'input window, operand 0, single buffered']
    #allocation3 [shape = 's32[1]{0}', space=sflag, size = 0x4, scoped, tag = 'scoped memory for tpu_custom_call.1']
    #allocation4 [shape = 's32[1]{0}', space=sflag, size = 0x4, scoped, tag = 'scoped memory for tpu_custom_call.1']
    #allocation5 [shape = 'u8[32768]{0}', space=vmem, size = 0x8000, scoped, tag = 'input window, operand 1, single buffered']
    #allocation6 [shape = 's32[1]{0}', space=sflag, size = 0x4, scoped, tag = 'scoped memory for tpu_custom_call.1']
    #allocation7 [shape = 'u8[131072]{0}', space=vmem, size = 0x20000, scoped, tag = 'input window, operand 3, single buffered']
    #allocation8 [shape = 'u8[32768]{0}', space=vmem, size = 0x8000, scoped, tag = 'input window, operand 5, single buffered']
    #allocation9 [shape = 's32[1]{0}', space=sflag, size = 0x4, scoped, tag = 'scoped memory for tpu_custom_call.1']
    #allocation10 [shape = 'u8[32768]{0}', space=vmem, size = 0x8000, scoped, tag = 'input window, operand 7, single buffered']
    #allocation11 [shape = 'u8[16384]{0}', space=vmem, size = 0x4000, scoped, tag = 'output window, operand 0, single buffered']
    %14 = vsyncpa [#allocation3], 0
    %15 = vsyncpa [#allocation6], 0
    %16 = vsyncpa [#allocation9], 0
    %17 = vsyncpa [#allocation4], 0
    // Predicated region
    $region2: #{tpu_custom_call.1} parent=1 // pred_check
      _
    $region3: #{tpu_custom_call.1} parent=1 // pred_check_branch
      %19 = sbr.rel (0) target = $region5
    $region4: #{tpu_custom_call.1} parent=1 // pred_region
      %s21 = ssub.s32 256, 256
      %22 = vsyncadd [#allocation3], %s21
      %s23 = sshll.u32 [#allocation2], 4
      %s24 = int_to_ptr.vmem [resolvable:$true] %s23
      %29 = dma.hbm_to_vmem [thread:$0]  %s0, 256, %s24, [#allocation3], 64, 64, 4
    $region5: #{tpu_custom_call.1} parent=1 // pred_fallthru
      _
    // Predicated region
    $region6: #{tpu_custom_call.1} parent=1 // pred_check
      _
    $region7: #{tpu_custom_call.1} parent=1 // pred_check_branch
      %31 = sbr.rel (0) target = $region9
    $region8: #{tpu_custom_call.1} parent=1 // pred_region
      %s33 = ssub.s32 1024, 1024
      %34 = vsyncadd [#allocation6], %s33
      %s35 = sshll.u32 [#allocation5], 4
      %s36 = int_to_ptr.vmem [resolvable:$true] %s35
      %41 = dma.hbm_to_vmem [thread:$0]  %s1, 1024, %s36, [#allocation6], 256, 256, 16
    $region9: #{tpu_custom_call.1} parent=1 // pred_fallthru
      _
    // Predicated region
    $region10: #{tpu_custom_call.1} parent=1 // pred_check
      _
    $region11: #{tpu_custom_call.1} parent=1 // pred_check_branch
      %43 = sbr.rel (0) target = $region13
    $region12: #{tpu_custom_call.1} parent=1 // pred_region
      _
    $region13: #{tpu_custom_call.1} parent=1 // pred_fallthru
      _
    // Predicated region
    $region14: #{tpu_custom_call.1} parent=1 // pred_check
      _
    $region15: #{tpu_custom_call.1} parent=1 // pred_check_branch
      %45 = sbr.rel (0) target = $region17
    $region16: #{tpu_custom_call.1} parent=1 // pred_region
      %s47 = ssub.s32 4096, 4096
      %48 = vsyncadd [#allocation6], %s47
      %s49 = sshll.u32 [#allocation7], 4
      %s50 = int_to_ptr.vmem [resolvable:$true] %s49
      %55 = dma.hbm_to_vmem [thread:$0]  %s3, 4096, %s50, [#allocation6], 64, 64, 4
    $region17: #{tpu_custom_call.1} parent=1 // pred_fallthru
      _
    // Predicated region
    $region18: #{tpu_custom_call.1} parent=1 // pred_check
      _
    $region19: #{tpu_custom_call.1} parent=1 // pred_check_branch
      %57 = sbr.rel (0) target = $region21
    $region20: #{tpu_custom_call.1} parent=1 // pred_region
      _
    $region21: #{tpu_custom_call.1} parent=1 // pred_fallthru
      _
    // Predicated region
    $region22: #{tpu_custom_call.1} parent=1 // pred_check
      _
    $region23: #{tpu_custom_call.1} parent=1 // pred_check_branch
      %59 = sbr.rel (0) target = $region25
    $region24: #{tpu_custom_call.1} parent=1 // pred_region
      %s61 = ssub.s32 1024, 1024
      %62 = vsyncadd [#allocation9], %s61
      %s63 = sshll.u32 [#allocation8], 4
      %s64 = int_to_ptr.vmem [resolvable:$true] %s63
      %69 = dma.hbm_to_vmem [thread:$0]  %s5, 1024, %s64, [#allocation9], 64, 64, 4
    $region25: #{tpu_custom_call.1} parent=1 // pred_fallthru
      _
    // Predicated region
    $region26: #{tpu_custom_call.1} parent=1 // pred_check
      _
    $region27: #{tpu_custom_call.1} parent=1 // pred_check_branch
      %71 = sbr.rel (0) target = $region29
    $region28: #{tpu_custom_call.1} parent=1 // pred_region
      _
    $region29: #{tpu_custom_call.1} parent=1 // pred_fallthru
      _
    // Predicated region
    $region30: #{tpu_custom_call.1} parent=1 // pred_check
      _
    $region31: #{tpu_custom_call.1} parent=1 // pred_check_branch
      %73 = sbr.rel (0) target = $region33
    $region32: #{tpu_custom_call.1} parent=1 // pred_region
      %s75 = ssub.s32 1024, 1024
      %76 = vsyncadd [#allocation9], %s75
      %s77 = sshll.u32 [#allocation10], 4
      %s78 = int_to_ptr.vmem [resolvable:$true] %s77
      %83 = dma.hbm_to_vmem [thread:$0]  %s7, 1024, %s78, [#allocation9], 64, 64, 4
    $region33: #{tpu_custom_call.1} parent=1 // pred_fallthru
      _
    // Predicated region
    $region34: #{tpu_custom_call.1} parent=1 // pred_check
      _
    $region35: #{tpu_custom_call.1} parent=1 // pred_check_branch
      %85 = sbr.rel (0) target = $region37
    $region36: #{tpu_custom_call.1} parent=1 // pred_region
      _
    $region37: #{tpu_custom_call.1} parent=1 // pred_fallthru
      _
    // Predicated region
    $region38: #{tpu_custom_call.1} parent=1 // pred_check
      _
    $region39: #{tpu_custom_call.1} parent=1 // pred_check_branch
      %87 = sbr.rel (0) target = $region41
    $region40: #{tpu_custom_call.1} parent=1 // pred_region
      %88 = dma.done [#allocation3], 256
    $region41: #{tpu_custom_call.1} parent=1 // pred_fallthru
      _
    // Predicated region
    $region42: #{tpu_custom_call.1} parent=1 // pred_check
      _
    $region43: #{tpu_custom_call.1} parent=1 // pred_check_branch
      %90 = sbr.rel (0) target = $region45
    $region44: #{tpu_custom_call.1} parent=1 // pred_region
      %91 = dma.done [#allocation6], 1024
    $region45: #{tpu_custom_call.1} parent=1 // pred_fallthru
      _
    // Predicated region
    $region46: #{tpu_custom_call.1} parent=1 // pred_check
      _
    $region47: #{tpu_custom_call.1} parent=1 // pred_check_branch
      %93 = sbr.rel (0) target = $region49
    $region48: #{tpu_custom_call.1} parent=1 // pred_region
      %94 = dma.done [#allocation6], 4096
    $region49: #{tpu_custom_call.1} parent=1 // pred_fallthru
      _
    // Predicated region
    $region50: #{tpu_custom_call.1} parent=1 // pred_check
      _
    $region51: #{tpu_custom_call.1} parent=1 // pred_check_branch
      %96 = sbr.rel (0) target = $region53
    $region52: #{tpu_custom_call.1} parent=1 // pred_region
      %97 = dma.done [#allocation9], 1024
    $region53: #{tpu_custom_call.1} parent=1 // pred_fallthru
      _
    // Predicated region
    $region54: #{tpu_custom_call.1} parent=1 // pred_check
      _
    $region55: #{tpu_custom_call.1} parent=1 // pred_check_branch
      %99 = sbr.rel (0) target = $region57
    $region56: #{tpu_custom_call.1} parent=1 // pred_region
      %100 = dma.done [#allocation9], 1024
    $region57: #{tpu_custom_call.1} parent=1 // pred_fallthru
      _
    %v102 = vld [vmem:[#allocation2] sm:$0xf]
    %v103 = vld [vmem:[#allocation2 + $0x4] sm:$0xf]
    %v104 = vld [vmem:[#allocation2 + $0x8] sm:$0xf]
    %v105 = vld [vmem:[#allocation2 + $0xc] sm:$0xf]
    %v106 = vld [vmem:[#allocation5] sm:$0xff]
    %v107 = vld [vmem:[#allocation5 + $0x8] sm:$0xff]
    %v108 = vld [vmem:[#allocation5 + $0x10] sm:$0xff]
    %v109 = vld [vmem:[#allocation5 + $0x18] sm:$0xff]
    %v110 = vld [vmem:[#allocation5 + $0x20] sm:$0xff]
    %v111 = vld [vmem:[#allocation5 + $0x28] sm:$0xff]
    %v112 = vld [vmem:[#allocation5 + $0x30] sm:$0xff]
    %v113 = vld [vmem:[#allocation5 + $0x38] sm:$0xff]
    %v114 = vld [vmem:[%s2] sm:$0xf]
    %v116 = vlaneseq
    %v117 = vshrl.u32 %v116, 7
    %v118 = vsub.s32 0, %v117
    %v119 = vrot.slane %v114, %v118
    %v120 = vlaneseq
    %v121 = vshrl.u32 %v120, 7
    %v122 = vsub.s32 1, %v121
    %v123 = vrot.slane %v114, %v122
    %v124 = vlaneseq
    %v125 = vshrl.u32 %v124, 7
    %v126 = vsub.s32 2, %v125
    %v127 = vrot.slane %v114, %v126
    %v128 = vlaneseq
    %v129 = vshrl.u32 %v128, 7
    %v130 = vsub.s32 3, %v129
    %v131 = vrot.slane %v114, %v130
    %v140 = vunpack.c.l.b16 %v102
    %v141 = vunpack.c.l.b16 %v103
    %v142 = vunpack.c.l.b16 %v104
    %v143 = vunpack.c.l.b16 %v105
    %v144 = vpack.c.b16 %v141, %v140
    %v145 = vpack.c.b16 %v143, %v142
    %v154 = vunpack.c.l.b16 %v106
    %v155 = vunpack.c.h.b16 %v106
    %v156 = vunpack.c.l.b16 %v107
    %v157 = vunpack.c.h.b16 %v107
    %v158 = vunpack.c.l.b16 %v108
    %v159 = vunpack.c.h.b16 %v108
    %v160 = vunpack.c.l.b16 %v109
    %v161 = vunpack.c.h.b16 %v109
    %v162 = vunpack.c.l.b16 %v110
    %v163 = vunpack.c.h.b16 %v110
    %v164 = vunpack.c.l.b16 %v111
    %v165 = vunpack.c.h.b16 %v111
    %v166 = vunpack.c.l.b16 %v112
    %v167 = vunpack.c.h.b16 %v112
    %v168 = vunpack.c.l.b16 %v113
    %v169 = vunpack.c.h.b16 %v113
    %v170 = vpack.c.b16 %v158, %v154
    %v171 = vpack.c.b16 %v159, %v155
    %v172 = vpack.c.b16 %v160, %v156
    %v173 = vpack.c.b16 %v161, %v157
    %v174 = vpack.c.b16 %v166, %v162
    %v175 = vpack.c.b16 %v167, %v163
    %v176 = vpack.c.b16 %v168, %v164
    %v177 = vpack.c.b16 %v169, %v165
    %vm186 = vcmask 261120
    %v188 = vsel %vm186, %v144, 0
    %v191 = vsel %vm186, %v145, 0
    %193 = vmatprep.subr.bf16.mxu0 %v171
    %194 = vmatpush1.bf16.msra.mxu0 %v170
    %195 = vmatprep.subr.bf16.mxu0 %v175
    %196 = vmatpush1.bf16.msra.mxu0 %v174
    %197 = vmatprep.subr.bf16.mxu0 0
    %198 = vmatpush1.bf16.msra.mxu0 0
    %199 = vmatprep.subr.bf16.mxu0 0
    %200 = vmatpush1.bf16.msra.mxu0 0
    %201 = vmatprep.subr.bf16.mxu0 0
    %202 = vmatpush1.bf16.msra.mxu0 0
    %203 = vmatprep.subr.bf16.mxu0 0
    %204 = vmatpush1.bf16.msra.mxu0 0
    %205 = vmatprep.subr.bf16.mxu0 0
    %206 = vmatpush1.bf16.msra.mxu0 0
    %207 = vmatprep.subr.bf16.mxu0 0
    %208 = vmatpush1.bf16.msra.mxu0 0
    %209 = vmatprep.subr.bf16.mxu0 0
    %210 = vmatpush1.bf16.msra.mxu0 0
    %211 = vmatprep.subr.bf16.mxu0 0
    %212 = vmatpush1.bf16.msra.mxu0 0
    %213 = vmatprep.subr.bf16.mxu0 0
    %214 = vmatpush1.bf16.msra.mxu0 0
    %215 = vmatprep.subr.bf16.mxu0 0
    %216 = vmatpush1.bf16.msra.mxu0 0
    %217 = vmatprep.subr.bf16.mxu0 0
    %218 = vmatpush1.bf16.msra.mxu0 0
    %219 = vmatprep.subr.bf16.mxu0 0
    %220 = vmatpush1.bf16.msra.mxu0 0
    %221 = vmatprep.subr.bf16.mxu0 0
    %222 = vmatpush1.bf16.msra.mxu0 0
    %223 = vmatprep.subr.bf16.mxu0 0
    %224 = vmatpush1.bf16.msra.mxu0 0
    %225 = vmatprep.mubr.bf16.mxu0 0
    %226 = vmatmul.mubr.bf16.gmra.mrb[0].mxu0 %v188
    %v227 = vpop.f32.mrb[0].mxu0
    %v228 = vadd.f32 %v119, %v227
    %v229 = vpop.f32.mrb[0].mxu0
    %v230 = vadd.f32 %v123, %v229
    %v231 = vpop.f32.mrb[0].mxu0
    %v232 = vadd.f32 %v119, %v231
    %v233 = vpop.f32.mrb[0].mxu0
    %v234 = vadd.f32 %v123, %v233
    %235 = vmatprep.mubr.bf16.mxu0 0
    %236 = vmatmul.mubr.bf16.gmra.mrb[0].mxu0 %v191
    %v237 = vpop.f32.mrb[0].mxu0
    %v238 = vadd.f32 %v119, %v237
    %v239 = vpop.f32.mrb[0].mxu0
    %v240 = vadd.f32 %v123, %v239
    %v241 = vpop.f32.mrb[0].mxu0
    %v242 = vadd.f32 %v119, %v241
    %v243 = vpop.f32.mrb[0].mxu0
    %v244 = vadd.f32 %v123, %v243
    %245 = vdwg.mxu0
    %246 = vmatprep.subr.bf16.mxu0 %v173
    %247 = vmatpush1.bf16.msra.mxu0 %v172
    %248 = vmatprep.subr.bf16.mxu0 %v177
    %249 = vmatpush1.bf16.msra.mxu0 %v176
    %250 = vmatprep.subr.bf16.mxu0 0
    %251 = vmatpush1.bf16.msra.mxu0 0
    %252 = vmatprep.subr.bf16.mxu0 0
    %253 = vmatpush1.bf16.msra.mxu0 0
    %254 = vmatprep.subr.bf16.mxu0 0
    %255 = vmatpush1.bf16.msra.mxu0 0
    %256 = vmatprep.subr.bf16.mxu0 0
    %257 = vmatpush1.bf16.msra.mxu0 0
    %258 = vmatprep.subr.bf16.mxu0 0
    %259 = vmatpush1.bf16.msra.mxu0 0
    %260 = vmatprep.subr.bf16.mxu0 0
    %261 = vmatpush1.bf16.msra.mxu0 0
    %262 = vmatprep.subr.bf16.mxu0 0
    %263 = vmatpush1.bf16.msra.mxu0 0
    %264 = vmatprep.subr.bf16.mxu0 0
    %265 = vmatpush1.bf16.msra.mxu0 0
    %266 = vmatprep.subr.bf16.mxu0 0
    %267 = vmatpush1.bf16.msra.mxu0 0
    %268 = vmatprep.subr.bf16.mxu0 0
    %269 = vmatpush1.bf16.msra.mxu0 0
    %270 = vmatprep.subr.bf16.mxu0 0
    %271 = vmatpush1.bf16.msra.mxu0 0
    %272 = vmatprep.subr.bf16.mxu0 0
    %273 = vmatpush1.bf16.msra.mxu0 0
    %274 = vmatprep.subr.bf16.mxu0 0
    %275 = vmatpush1.bf16.msra.mxu0 0
    %276 = vmatprep.subr.bf16.mxu0 0
    %277 = vmatpush1.bf16.msra.mxu0 0
    %278 = vmatprep.mubr.bf16.mxu0 0
    %279 = vmatmul.mubr.bf16.gmra.mrb[0].mxu0 %v188
    %v280 = vpop.f32.mrb[0].mxu0
    %v281 = vadd.f32 %v127, %v280
    %v282 = vpop.f32.mrb[0].mxu0
    %v283 = vadd.f32 %v131, %v282
    %v284 = vpop.f32.mrb[0].mxu0
    %v285 = vadd.f32 %v127, %v284
    %v286 = vpop.f32.mrb[0].mxu0
    %v287 = vadd.f32 %v131, %v286
    %288 = vmatprep.mubr.bf16.mxu0 0
    %289 = vmatmul.mubr.bf16.gmra.mrb[0].mxu0 %v191
    %v290 = vpop.f32.mrb[0].mxu0
    %v291 = vadd.f32 %v127, %v290
    %v292 = vpop.f32.mrb[0].mxu0
    %v293 = vadd.f32 %v131, %v292
    %v294 = vpop.f32.mrb[0].mxu0
    %v295 = vadd.f32 %v127, %v294
    %v296 = vpop.f32.mrb[0].mxu0
    %v297 = vadd.f32 %v131, %v296
    %298 = vdwg.mxu0
    %v299 = vmax.f32 %v228, 0.0
    %v300 = vmax.f32 %v230, 0.0
    %v301 = vmax.f32 %v281, 0.0
    %v302 = vmax.f32 %v283, 0.0
    %v303 = vmax.f32 %v232, 0.0
    %v304 = vmax.f32 %v234, 0.0
    %v305 = vmax.f32 %v285, 0.0
    %v306 = vmax.f32 %v287, 0.0
    %v307 = vmax.f32 %v238, 0.0
    %v308 = vmax.f32 %v240, 0.0
    %v309 = vmax.f32 %v291, 0.0
    %v310 = vmax.f32 %v293, 0.0
    %v311 = vmax.f32 %v242, 0.0
    %v312 = vmax.f32 %v244, 0.0
    %v313 = vmax.f32 %v295, 0.0
    %v314 = vmax.f32 %v297, 0.0
    %v315 = vpack.c.bf16 %v303, %v299
    %v316 = vpack.c.bf16 %v304, %v300
    %v317 = vpack.c.bf16 %v305, %v301
    %v318 = vpack.c.bf16 %v306, %v302
    %v319 = vpack.c.bf16 %v311, %v307
    %v320 = vpack.c.bf16 %v312, %v308
    %v321 = vpack.c.bf16 %v313, %v309
    %v322 = vpack.c.bf16 %v314, %v310
    %v323 = vld [vmem:[#allocation7] sm:$0xf]
    %v324 = vld [vmem:[#allocation7 + $0x4] sm:$0xf]
    %v325 = vld [vmem:[#allocation7 + $0x8] sm:$0xf]
    %v326 = vld [vmem:[#allocation7 + $0xc] sm:$0xf]
    %v327 = vld [vmem:[#allocation7 + $0x10] sm:$0xf]
    %v328 = vld [vmem:[#allocation7 + $0x14] sm:$0xf]
    %v329 = vld [vmem:[#allocation7 + $0x18] sm:$0xf]
    %v330 = vld [vmem:[#allocation7 + $0x1c] sm:$0xf]
    %v331 = vld [vmem:[#allocation7 + $0x20] sm:$0xf]
    %v332 = vld [vmem:[#allocation7 + $0x24] sm:$0xf]
    %v333 = vld [vmem:[#allocation7 + $0x28] sm:$0xf]
    %v334 = vld [vmem:[#allocation7 + $0x2c] sm:$0xf]
    %v335 = vld [vmem:[#allocation7 + $0x30] sm:$0xf]
    %v336 = vld [vmem:[#allocation7 + $0x34] sm:$0xf]
    %v337 = vld [vmem:[#allocation7 + $0x38] sm:$0xf]
    %v338 = vld [vmem:[#allocation7 + $0x3c] sm:$0xf]
    %v339 = vld [vmem:[#allocation7 + $0x40] sm:$0xf]
    %v340 = vld [vmem:[#allocation7 + $0x44] sm:$0xf]
    %v341 = vld [vmem:[#allocation7 + $0x48] sm:$0xf]
    %v342 = vld [vmem:[#allocation7 + $0x4c] sm:$0xf]
    %v343 = vld [vmem:[#allocation7 + $0x50] sm:$0xf]
    %v344 = vld [vmem:[#allocation7 + $0x54] sm:$0xf]
    %v345 = vld [vmem:[#allocation7 + $0x58] sm:$0xf]
    %v346 = vld [vmem:[#allocation7 + $0x5c] sm:$0xf]
    %v347 = vld [vmem:[#allocation7 + $0x60] sm:$0xf]
    %v348 = vld [vmem:[#allocation7 + $0x64] sm:$0xf]
    %v349 = vld [vmem:[#allocation7 + $0x68] sm:$0xf]
    %v350 = vld [vmem:[#allocation7 + $0x6c] sm:$0xf]
    %v351 = vld [vmem:[#allocation7 + $0x70] sm:$0xf]
    %v352 = vld [vmem:[#allocation7 + $0x74] sm:$0xf]
    %v353 = vld [vmem:[#allocation7 + $0x78] sm:$0xf]
    %v354 = vld [vmem:[#allocation7 + $0x7c] sm:$0xf]
    %v355 = vld [vmem:[#allocation7 + $0x80] sm:$0xf]
    %v356 = vld [vmem:[#allocation7 + $0x84] sm:$0xf]
    %v357 = vld [vmem:[#allocation7 + $0x88] sm:$0xf]
    %v358 = vld [vmem:[#allocation7 + $0x8c] sm:$0xf]
    %v359 = vld [vmem:[#allocation7 + $0x90] sm:$0xf]
    %v360 = vld [vmem:[#allocation7 + $0x94] sm:$0xf]
    %v361 = vld [vmem:[#allocation7 + $0x98] sm:$0xf]
    %v362 = vld [vmem:[#allocation7 + $0x9c] sm:$0xf]
    %v363 = vld [vmem:[#allocation7 + $0xa0] sm:$0xf]
    %v364 = vld [vmem:[#allocation7 + $0xa4] sm:$0xf]
    %v365 = vld [vmem:[#allocation7 + $0xa8] sm:$0xf]
    %v366 = vld [vmem:[#allocation7 + $0xac] sm:$0xf]
    %v367 = vld [vmem:[#allocation7 + $0xb0] sm:$0xf]
    %v368 = vld [vmem:[#allocation7 + $0xb4] sm:$0xf]
    %v369 = vld [vmem:[#allocation7 + $0xb8] sm:$0xf]
    %v370 = vld [vmem:[#allocation7 + $0xbc] sm:$0xf]
    %v371 = vld [vmem:[#allocation7 + $0xc0] sm:$0xf]
    %v372 = vld [vmem:[#allocation7 + $0xc4] sm:$0xf]
    %v373 = vld [vmem:[#allocation7 + $0xc8] sm:$0xf]
    %v374 = vld [vmem:[#allocation7 + $0xcc] sm:$0xf]
    %v375 = vld [vmem:[#allocation7 + $0xd0] sm:$0xf]
    %v376 = vld [vmem:[#allocation7 + $0xd4] sm:$0xf]
    %v377 = vld [vmem:[#allocation7 + $0xd8] sm:$0xf]
    %v378 = vld [vmem:[#allocation7 + $0xdc] sm:$0xf]
    %v379 = vld [vmem:[#allocation7 + $0xe0] sm:$0xf]
    %v380 = vld [vmem:[#allocation7 + $0xe4] sm:$0xf]
    %v381 = vld [vmem:[#allocation7 + $0xe8] sm:$0xf]
    %v382 = vld [vmem:[#allocation7 + $0xec] sm:$0xf]
    %v383 = vld [vmem:[#allocation7 + $0xf0] sm:$0xf]
    %v384 = vld [vmem:[#allocation7 + $0xf4] sm:$0xf]
    %v385 = vld [vmem:[#allocation7 + $0xf8] sm:$0xf]
    %v386 = vld [vmem:[#allocation7 + $0xfc] sm:$0xf]
    %v387 = vld [vmem:[%s4] sm:$0x1]
    %v389 = vlaneseq
    %v390 = vshrl.u32 %v389, 7
    %v391 = vsub.s32 0, %v390
    %v392 = vrot.slane %v387, %v391
    %v458 = vunpack.c.l.b16 %v323
    %v459 = vunpack.c.l.b16 %v324
    %v460 = vunpack.c.l.b16 %v325
    %v461 = vunpack.c.l.b16 %v326
    %v462 = vunpack.c.l.b16 %v327
    %v463 = vunpack.c.l.b16 %v328
    %v464 = vunpack.c.l.b16 %v329
    %v465 = vunpack.c.l.b16 %v330
    %v466 = vunpack.c.l.b16 %v331
    %v467 = vunpack.c.l.b16 %v332
    %v468 = vunpack.c.l.b16 %v333
    %v469 = vunpack.c.l.b16 %v334
    %v470 = vunpack.c.l.b16 %v335
    %v471 = vunpack.c.l.b16 %v336
    %v472 = vunpack.c.l.b16 %v337
    %v473 = vunpack.c.l.b16 %v338
    %v474 = vunpack.c.l.b16 %v339
    %v475 = vunpack.c.l.b16 %v340
    %v476 = vunpack.c.l.b16 %v341
    %v477 = vunpack.c.l.b16 %v342
    %v478 = vunpack.c.l.b16 %v343
    %v479 = vunpack.c.l.b16 %v344
    %v480 = vunpack.c.l.b16 %v345
    %v481 = vunpack.c.l.b16 %v346
    %v482 = vunpack.c.l.b16 %v347
    %v483 = vunpack.c.l.b16 %v348
    %v484 = vunpack.c.l.b16 %v349
    %v485 = vunpack.c.l.b16 %v350
    %v486 = vunpack.c.l.b16 %v351
    %v487 = vunpack.c.l.b16 %v352
    %v488 = vunpack.c.l.b16 %v353
    %v489 = vunpack.c.l.b16 %v354
    %v490 = vunpack.c.l.b16 %v355
    %v491 = vunpack.c.l.b16 %v356
    %v492 = vunpack.c.l.b16 %v357
    %v493 = vunpack.c.l.b16 %v358
    %v494 = vunpack.c.l.b16 %v359
    %v495 = vunpack.c.l.b16 %v360
    %v496 = vunpack.c.l.b16 %v361
    %v497 = vunpack.c.l.b16 %v362
    %v498 = vunpack.c.l.b16 %v363
    %v499 = vunpack.c.l.b16 %v364
    %v500 = vunpack.c.l.b16 %v365
    %v501 = vunpack.c.l.b16 %v366
    %v502 = vunpack.c.l.b16 %v367
    %v503 = vunpack.c.l.b16 %v368
    %v504 = vunpack.c.l.b16 %v369
    %v505 = vunpack.c.l.b16 %v370
    %v506 = vunpack.c.l.b16 %v371
    %v507 = vunpack.c.l.b16 %v372
    %v508 = vunpack.c.l.b16 %v373
    %v509 = vunpack.c.l.b16 %v374
    %v510 = vunpack.c.l.b16 %v375
    %v511 = vunpack.c.l.b16 %v376
    %v512 = vunpack.c.l.b16 %v377
    %v513 = vunpack.c.l.b16 %v378
    %v514 = vunpack.c.l.b16 %v379
    %v515 = vunpack.c.l.b16 %v380
    %v516 = vunpack.c.l.b16 %v381
    %v517 = vunpack.c.l.b16 %v382
    %v518 = vunpack.c.l.b16 %v383
    %v519 = vunpack.c.l.b16 %v384
    %v520 = vunpack.c.l.b16 %v385
    %v521 = vunpack.c.l.b16 %v386
    %v522 = vpack.c.b16 %v459, %v458
    %v523 = vpack.c.b16 %v461, %v460
    %v524 = vpack.c.b16 %v463, %v462
    %v525 = vpack.c.b16 %v465, %v464
    %v526 = vpack.c.b16 %v467, %v466
    %v527 = vpack.c.b16 %v469, %v468
    %v528 = vpack.c.b16 %v471, %v470
    %v529 = vpack.c.b16 %v473, %v472
    %v530 = vpack.c.b16 %v475, %v474
    %v531 = vpack.c.b16 %v477, %v476
    %v532 = vpack.c.b16 %v479, %v478
    %v533 = vpack.c.b16 %v481, %v480
    %v534 = vpack.c.b16 %v483, %v482
    %v535 = vpack.c.b16 %v485, %v484
    %v536 = vpack.c.b16 %v487, %v486
    %v537 = vpack.c.b16 %v489, %v488
    %v538 = vpack.c.b16 %v491, %v490
    %v539 = vpack.c.b16 %v493, %v492
    %v540 = vpack.c.b16 %v495, %v494
    %v541 = vpack.c.b16 %v497, %v496
    %v542 = vpack.c.b16 %v499, %v498
    %v543 = vpack.c.b16 %v501, %v500
    %v544 = vpack.c.b16 %v503, %v502
    %v545 = vpack.c.b16 %v505, %v504
    %v546 = vpack.c.b16 %v507, %v506
    %v547 = vpack.c.b16 %v509, %v508
    %v548 = vpack.c.b16 %v511, %v510
    %v549 = vpack.c.b16 %v513, %v512
    %v550 = vpack.c.b16 %v515, %v514
    %v551 = vpack.c.b16 %v517, %v516
    %v552 = vpack.c.b16 %v519, %v518
    %v553 = vpack.c.b16 %v521, %v520
    %586 = vmatprep.subr.bf16.mxu0 0
    %587 = vmatpush1.bf16.msra.mxu0 %v522
    %588 = vmatprep.subr.bf16.mxu0 0
    %589 = vmatpush1.bf16.msra.mxu0 %v523
    %590 = vmatprep.subr.bf16.mxu0 0
    %591 = vmatpush1.bf16.msra.mxu0 %v524
    %592 = vmatprep.subr.bf16.mxu0 0
    %593 = vmatpush1.bf16.msra.mxu0 %v525
    %594 = vmatprep.subr.bf16.mxu0 0
    %595 = vmatpush1.bf16.msra.mxu0 %v526
    %596 = vmatprep.subr.bf16.mxu0 0
    %597 = vmatpush1.bf16.msra.mxu0 %v527
    %598 = vmatprep.subr.bf16.mxu0 0
    %599 = vmatpush1.bf16.msra.mxu0 %v528
    %600 = vmatprep.subr.bf16.mxu0 0
    %601 = vmatpush1.bf16.msra.mxu0 %v529
    %602 = vmatprep.subr.bf16.mxu0 0
    %603 = vmatpush1.bf16.msra.mxu0 %v530
    %604 = vmatprep.subr.bf16.mxu0 0
    %605 = vmatpush1.bf16.msra.mxu0 %v531
    %606 = vmatprep.subr.bf16.mxu0 0
    %607 = vmatpush1.bf16.msra.mxu0 %v532
    %608 = vmatprep.subr.bf16.mxu0 0
    %609 = vmatpush1.bf16.msra.mxu0 %v533
    %610 = vmatprep.subr.bf16.mxu0 0
    %611 = vmatpush1.bf16.msra.mxu0 %v534
    %612 = vmatprep.subr.bf16.mxu0 0
    %613 = vmatpush1.bf16.msra.mxu0 %v535
    %614 = vmatprep.subr.bf16.mxu0 0
    %615 = vmatpush1.bf16.msra.mxu0 %v536
    %616 = vmatprep.subr.bf16.mxu0 0
    %617 = vmatpush1.bf16.msra.mxu0 %v537
    %618 = vmatprep.mubr.bf16.mxu0 %v316
    %619 = vmatmul.mubr.bf16.gmra.mrb[0].mxu0 %v315
    %v620 = vpop.f32.mrb[0].mxu0
    %v621 = vadd.f32 %v392, %v620
    %v622 = vpop.f32.mrb[0].mxu0
    %v623 = vpop.f32.mrb[0].mxu0
    %v624 = vadd.f32 %v392, %v623
    %v625 = vpop.f32.mrb[0].mxu0
    %626 = vmatprep.mubr.bf16.mxu0 %v320
    %627 = vmatmul.mubr.bf16.gmra.mrb[0].mxu0 %v319
    %v628 = vpop.f32.mrb[0].mxu0
    %v629 = vadd.f32 %v392, %v628
    %v630 = vpop.f32.mrb[0].mxu0
    %v631 = vpop.f32.mrb[0].mxu0
    %v632 = vadd.f32 %v392, %v631
    %v633 = vpop.f32.mrb[0].mxu0
    %634 = vdwg.mxu0
    %635 = vmatprep.subr.bf16.mxu0 0
    %636 = vmatpush1.bf16.msra.mxu0 %v538
    %637 = vmatprep.subr.bf16.mxu0 0
    %638 = vmatpush1.bf16.msra.mxu0 %v539
    %639 = vmatprep.subr.bf16.mxu0 0
    %640 = vmatpush1.bf16.msra.mxu0 %v540
    %641 = vmatprep.subr.bf16.mxu0 0
    %642 = vmatpush1.bf16.msra.mxu0 %v541
    %643 = vmatprep.subr.bf16.mxu0 0
    %644 = vmatpush1.bf16.msra.mxu0 %v542
    %645 = vmatprep.subr.bf16.mxu0 0
    %646 = vmatpush1.bf16.msra.mxu0 %v543
    %647 = vmatprep.subr.bf16.mxu0 0
    %648 = vmatpush1.bf16.msra.mxu0 %v544
    %649 = vmatprep.subr.bf16.mxu0 0
    %650 = vmatpush1.bf16.msra.mxu0 %v545
    %651 = vmatprep.subr.bf16.mxu0 0
    %652 = vmatpush1.bf16.msra.mxu0 %v546
    %653 = vmatprep.subr.bf16.mxu0 0
    %654 = vmatpush1.bf16.msra.mxu0 %v547
    %655 = vmatprep.subr.bf16.mxu0 0
    %656 = vmatpush1.bf16.msra.mxu0 %v548
    %657 = vmatprep.subr.bf16.mxu0 0
    %658 = vmatpush1.bf16.msra.mxu0 %v549
    %659 = vmatprep.subr.bf16.mxu0 0
    %660 = vmatpush1.bf16.msra.mxu0 %v550
    %661 = vmatprep.subr.bf16.mxu0 0
    %662 = vmatpush1.bf16.msra.mxu0 %v551
    %663 = vmatprep.subr.bf16.mxu0 0
    %664 = vmatpush1.bf16.msra.mxu0 %v552
    %665 = vmatprep.subr.bf16.mxu0 0
    %666 = vmatpush1.bf16.msra.mxu0 %v553
    %667 = vmatprep.mubr.bf16.mxu0 %v318
    %668 = vmatmul.mubr.bf16.gmra.mrb[0].mxu0 %v317
    %v669 = vpop.f32.mrb[0].mxu0
    %v670 = vadd.f32 %v621, %v669
    %v671 = vpop.f32.mrb[0].mxu0
    %v672 = vpop.f32.mrb[0].mxu0
    %v673 = vadd.f32 %v624, %v672
    %v674 = vpop.f32.mrb[0].mxu0
    %675 = vmatprep.mubr.bf16.mxu0 %v322
    %676 = vmatmul.mubr.bf16.gmra.mrb[0].mxu0 %v321
    %v677 = vpop.f32.mrb[0].mxu0
    %v678 = vadd.f32 %v629, %v677
    %v679 = vpop.f32.mrb[0].mxu0
    %v680 = vpop.f32.mrb[0].mxu0
    %v681 = vadd.f32 %v632, %v680
    %v682 = vpop.f32.mrb[0].mxu0
    %683 = vdwg.mxu0
    %v684 = vmax.f32 %v670, 0.0
    %v685 = vmax.f32 %v673, 0.0
    %v686 = vmax.f32 %v678, 0.0
    %v687 = vmax.f32 %v681, 0.0
    %v688 = vpack.c.bf16 %v685, %v684
    %v689 = vpack.c.bf16 %v687, %v686
    %v690 = vld [vmem:[#allocation8] sm:$0xf]
    %v691 = vld [vmem:[#allocation8 + $0x4] sm:$0xf]
    %v692 = vld [vmem:[#allocation8 + $0x8] sm:$0xf]
    %v693 = vld [vmem:[#allocation8 + $0xc] sm:$0xf]
    %v694 = vld [vmem:[#allocation8 + $0x10] sm:$0xf]
    %v695 = vld [vmem:[#allocation8 + $0x14] sm:$0xf]
    %v696 = vld [vmem:[#allocation8 + $0x18] sm:$0xf]
    %v697 = vld [vmem:[#allocation8 + $0x1c] sm:$0xf]
    %v698 = vld [vmem:[#allocation8 + $0x20] sm:$0xf]
    %v699 = vld [vmem:[#allocation8 + $0x24] sm:$0xf]
    %v700 = vld [vmem:[#allocation8 + $0x28] sm:$0xf]
    %v701 = vld [vmem:[#allocation8 + $0x2c] sm:$0xf]
    %v702 = vld [vmem:[#allocation8 + $0x30] sm:$0xf]
    %v703 = vld [vmem:[#allocation8 + $0x34] sm:$0xf]
    %v704 = vld [vmem:[#allocation8 + $0x38] sm:$0xf]
    %v705 = vld [vmem:[#allocation8 + $0x3c] sm:$0xf]
    %v706 = vld [vmem:[%s6] sm:$0x1]
    %v708 = vlaneseq
    %v709 = vshrl.u32 %v708, 7
    %v710 = vsub.s32 0, %v709
    %v711 = vrot.slane %v706, %v710
    %v729 = vunpack.c.l.b16 %v690
    %v730 = vunpack.c.l.b16 %v691
    %v731 = vunpack.c.l.b16 %v692
    %v732 = vunpack.c.l.b16 %v693
    %v733 = vunpack.c.l.b16 %v694
    %v734 = vunpack.c.l.b16 %v695
    %v735 = vunpack.c.l.b16 %v696
    %v736 = vunpack.c.l.b16 %v697
    %v737 = vunpack.c.l.b16 %v698
    %v738 = vunpack.c.l.b16 %v699
    %v739 = vunpack.c.l.b16 %v700
    %v740 = vunpack.c.l.b16 %v701
    %v741 = vunpack.c.l.b16 %v702
    %v742 = vunpack.c.l.b16 %v703
    %v743 = vunpack.c.l.b16 %v704
    %v744 = vunpack.c.l.b16 %v705
    %v745 = vpack.c.b16 %v730, %v729
    %v746 = vpack.c.b16 %v732, %v731
    %v747 = vpack.c.b16 %v734, %v733
    %v748 = vpack.c.b16 %v736, %v735
    %v749 = vpack.c.b16 %v738, %v737
    %v750 = vpack.c.b16 %v740, %v739
    %v751 = vpack.c.b16 %v742, %v741
    %v752 = vpack.c.b16 %v744, %v743
    %761 = vmatprep.subr.bf16.mxu0 0
    %762 = vmatpush1.bf16.msra.mxu0 %v745
    %763 = vmatprep.subr.bf16.mxu0 0
    %764 = vmatpush1.bf16.msra.mxu0 %v746
    %765 = vmatprep.subr.bf16.mxu0 0
    %766 = vmatpush1.bf16.msra.mxu0 %v747
    %767 = vmatprep.subr.bf16.mxu0 0
    %768 = vmatpush1.bf16.msra.mxu0 %v748
    %769 = vmatprep.subr.bf16.mxu0 0
    %770 = vmatpush1.bf16.msra.mxu0 %v749
    %771 = vmatprep.subr.bf16.mxu0 0
    %772 = vmatpush1.bf16.msra.mxu0 %v750
    %773 = vmatprep.subr.bf16.mxu0 0
    %774 = vmatpush1.bf16.msra.mxu0 %v751
    %775 = vmatprep.subr.bf16.mxu0 0
    %776 = vmatpush1.bf16.msra.mxu0 %v752
    %777 = vmatprep.subr.bf16.mxu0 0
    %778 = vmatpush1.bf16.msra.mxu0 0
    %779 = vmatprep.subr.bf16.mxu0 0
    %780 = vmatpush1.bf16.msra.mxu0 0
    %781 = vmatprep.subr.bf16.mxu0 0
    %782 = vmatpush1.bf16.msra.mxu0 0
    %783 = vmatprep.subr.bf16.mxu0 0
    %784 = vmatpush1.bf16.msra.mxu0 0
    %785 = vmatprep.subr.bf16.mxu0 0
    %786 = vmatpush1.bf16.msra.mxu0 0
    %787 = vmatprep.subr.bf16.mxu0 0
    %788 = vmatpush1.bf16.msra.mxu0 0
    %789 = vmatprep.subr.bf16.mxu0 0
    %790 = vmatpush1.bf16.msra.mxu0 0
    %791 = vmatprep.subr.bf16.mxu0 0
    %792 = vmatpush1.bf16.msra.mxu0 0
    %793 = vmatprep.mubr.bf16.mxu0 0
    %794 = vmatmul.mubr.bf16.gmra.mrb[0].mxu0 %v688
    %v795 = vpop.f32.mrb[0].mxu0
    %v796 = vadd.f32 %v711, %v795
    %v797 = vpop.f32.mrb[0].mxu0
    %v798 = vpop.f32.mrb[0].mxu0
    %v799 = vadd.f32 %v711, %v798
    %v800 = vpop.f32.mrb[0].mxu0
    %801 = vmatprep.mubr.bf16.mxu0 0
    %802 = vmatmul.mubr.bf16.gmra.mrb[0].mxu0 %v689
    %v803 = vpop.f32.mrb[0].mxu0
    %v804 = vadd.f32 %v711, %v803
    %v805 = vpop.f32.mrb[0].mxu0
    %v806 = vpop.f32.mrb[0].mxu0
    %v807 = vadd.f32 %v711, %v806
    %v808 = vpop.f32.mrb[0].mxu0
    %809 = vdwg.mxu0
    %v810 = vmax.f32 %v796, 0.0
    %v811 = vmax.f32 %v799, 0.0
    %v812 = vmax.f32 %v804, 0.0
    %v813 = vmax.f32 %v807, 0.0
    %v814 = vpack.c.bf16 %v811, %v810
    %v815 = vpack.c.bf16 %v813, %v812
    %v816 = vld [vmem:[#allocation10] sm:$0xf]
    %v817 = vld [vmem:[#allocation10 + $0x4] sm:$0xf]
    %v818 = vld [vmem:[#allocation10 + $0x8] sm:$0xf]
    %v819 = vld [vmem:[#allocation10 + $0xc] sm:$0xf]
    %v820 = vld [vmem:[#allocation10 + $0x10] sm:$0xf]
    %v821 = vld [vmem:[#allocation10 + $0x14] sm:$0xf]
    %v822 = vld [vmem:[#allocation10 + $0x18] sm:$0xf]
    %v823 = vld [vmem:[#allocation10 + $0x1c] sm:$0xf]
    %v824 = vld [vmem:[#allocation10 + $0x20] sm:$0xf]
    %v825 = vld [vmem:[#allocation10 + $0x24] sm:$0xf]
    %v826 = vld [vmem:[#allocation10 + $0x28] sm:$0xf]
    %v827 = vld [vmem:[#allocation10 + $0x2c] sm:$0xf]
    %v828 = vld [vmem:[#allocation10 + $0x30] sm:$0xf]
    %v829 = vld [vmem:[#allocation10 + $0x34] sm:$0xf]
    %v830 = vld [vmem:[#allocation10 + $0x38] sm:$0xf]
    %v831 = vld [vmem:[#allocation10 + $0x3c] sm:$0xf]
    %v832 = vld [vmem:[%s8] sm:$0x1]
    %v834 = vlaneseq
    %v835 = vshrl.u32 %v834, 7
    %v836 = vsub.s32 0, %v835
    %v837 = vrot.slane %v832, %v836
    %v855 = vunpack.c.l.b16 %v816
    %v856 = vunpack.c.l.b16 %v817
    %v857 = vunpack.c.l.b16 %v818
    %v858 = vunpack.c.l.b16 %v819
    %v859 = vunpack.c.l.b16 %v820
    %v860 = vunpack.c.l.b16 %v821
    %v861 = vunpack.c.l.b16 %v822
    %v862 = vunpack.c.l.b16 %v823
    %v863 = vunpack.c.l.b16 %v824
    %v864 = vunpack.c.l.b16 %v825
    %v865 = vunpack.c.l.b16 %v826
    %v866 = vunpack.c.l.b16 %v827
    %v867 = vunpack.c.l.b16 %v828
    %v868 = vunpack.c.l.b16 %v829
    %v869 = vunpack.c.l.b16 %v830
    %v870 = vunpack.c.l.b16 %v831
    %v871 = vpack.c.b16 %v856, %v855
    %v872 = vpack.c.b16 %v858, %v857
    %v873 = vpack.c.b16 %v860, %v859
    %v874 = vpack.c.b16 %v862, %v861
    %v875 = vpack.c.b16 %v864, %v863
    %v876 = vpack.c.b16 %v866, %v865
    %v877 = vpack.c.b16 %v868, %v867
    %v878 = vpack.c.b16 %v870, %v869
    %887 = vmatprep.subr.bf16.mxu0 0
    %888 = vmatpush1.bf16.msra.mxu0 %v871
    %889 = vmatprep.subr.bf16.mxu0 0
    %890 = vmatpush1.bf16.msra.mxu0 %v872
    %891 = vmatprep.subr.bf16.mxu0 0
    %892 = vmatpush1.bf16.msra.mxu0 %v873
    %893 = vmatprep.subr.bf16.mxu0 0
    %894 = vmatpush1.bf16.msra.mxu0 %v874
    %895 = vmatprep.subr.bf16.mxu0 0
    %896 = vmatpush1.bf16.msra.mxu0 %v875
    %897 = vmatprep.subr.bf16.mxu0 0
    %898 = vmatpush1.bf16.msra.mxu0 %v876
    %899 = vmatprep.subr.bf16.mxu0 0
    %900 = vmatpush1.bf16.msra.mxu0 %v877
    %901 = vmatprep.subr.bf16.mxu0 0
    %902 = vmatpush1.bf16.msra.mxu0 %v878
    %903 = vmatprep.subr.bf16.mxu0 0
    %904 = vmatpush1.bf16.msra.mxu0 0
    %905 = vmatprep.subr.bf16.mxu0 0
    %906 = vmatpush1.bf16.msra.mxu0 0
    %907 = vmatprep.subr.bf16.mxu0 0
    %908 = vmatpush1.bf16.msra.mxu0 0
    %909 = vmatprep.subr.bf16.mxu0 0
    %910 = vmatpush1.bf16.msra.mxu0 0
    %911 = vmatprep.subr.bf16.mxu0 0
    %912 = vmatpush1.bf16.msra.mxu0 0
    %913 = vmatprep.subr.bf16.mxu0 0
    %914 = vmatpush1.bf16.msra.mxu0 0
    %915 = vmatprep.subr.bf16.mxu0 0
    %916 = vmatpush1.bf16.msra.mxu0 0
    %917 = vmatprep.subr.bf16.mxu0 0
    %918 = vmatpush1.bf16.msra.mxu0 0
    %919 = vmatprep.mubr.bf16.mxu0 0
    %920 = vmatmul.mubr.bf16.gmra.mrb[0].mxu0 %v814
    %v921 = vpop.f32.mrb[0].mxu0
    %v922 = vadd.f32 %v837, %v921
    %v923 = vpop.f32.mrb[0].mxu0
    %v924 = vpop.f32.mrb[0].mxu0
    %v925 = vadd.f32 %v837, %v924
    %v926 = vpop.f32.mrb[0].mxu0
    %927 = vmatprep.mubr.bf16.mxu0 0
    %928 = vmatmul.mubr.bf16.gmra.mrb[0].mxu0 %v815
    %v929 = vpop.f32.mrb[0].mxu0
    %v930 = vadd.f32 %v837, %v929
    %v931 = vpop.f32.mrb[0].mxu0
    %v932 = vpop.f32.mrb[0].mxu0
    %v933 = vadd.f32 %v837, %v932
    %v934 = vpop.f32.mrb[0].mxu0
    %935 = vdwg.mxu0
    %936 = vst [vmem:[#allocation11] sm:$0xff] %v922
    %937 = vst [vmem:[#allocation11 + $0x8] sm:$0xff] %v925
    %938 = vst [vmem:[#allocation11 + $0x10] sm:$0xff] %v930
    %939 = vst [vmem:[#allocation11 + $0x18] sm:$0xff] %v933
    // Predicated region
    $region58: #{tpu_custom_call.1} parent=1 // pred_check
      _
    $region59: #{tpu_custom_call.1} parent=1 // pred_check_branch
      %941 = sbr.rel (0) target = $region61
    $region60: #{tpu_custom_call.1} parent=1 // pred_region
      %s943 = ssub.s32 512, 512
      %944 = vsyncadd [#allocation4], %s943
      %s945 = sshll.u32 [#allocation11], 4
      %s946 = int_to_ptr.vmem [resolvable:$true] %s945
      %951 = dma.vmem_to_hbm [thread:$0]  %s946, 512, %s9, [#allocation4], 128, 128, 8
    $region61: #{tpu_custom_call.1} parent=1 // pred_fallthru
      _
    // Predicated region
    $region62: #{tpu_custom_call.1} parent=1 // pred_check
      _
    $region63: #{tpu_custom_call.1} parent=1 // pred_check_branch
      %953 = sbr.rel (0) target = $region65
    $region64: #{tpu_custom_call.1} parent=1 // pred_region
      %954 = dma.done [#allocation4], 512
    $region65: #{tpu_custom_call.1} parent=1 // pred_fallthru
      _
    %955 = vsyncpa [#allocation3], 1
    %956 = vsyncpa [#allocation6], 1
    %957 = vsyncpa [#allocation9], 1
    %958 = vsyncpa [#allocation4], 1

</llo_original>
